<compile_context>
chip_gen: v5e
topology: v5e:2x2
jax: 0.10.0
libtpu: 0.0.40
codegen_flags: <defaults>
</compile_context>

<pallas_src>
import jax
import jax.numpy as jnp
from jax import lax
from jax.experimental import pallas as pl
from jax.experimental.pallas import tpu as pltpu


# --------------------------------------------------------------------------- #
# Fused kernel: masked complex spectral multiply + 1x1 channel mix             #
#   y[c]  = x_ft[c] * (masked complex weight[c])        (elementwise, complex)  #
#   out[o]= sum_c mix[o,c] * y[c]                       (channel mix, C == 4)   #
# Refs per batch grid step:                                                     #
#   xr/xi:  (C, F)  spectral real/imag planes of one batch element              #
#   wr/wi:  (C, F)  precomputed masked complex weight (grid-invariant, pinned)  #
#   mix:    (C, C)  spectral-normalised 1x1-conv weight (grid-invariant)        #
# C == 4 is far below MXU granularity, so the mix is C exact-f32 broadcast FMAs #
# on the VPU; swap in jnp.dot(mix, y, preferred_element_type=jnp.float32) with  #
# 128/256-multiple tiles for large channel counts.                              #
# --------------------------------------------------------------------------- #
def _spectral_mix_kernel(xr_ref, xi_ref, wr_ref, wi_ref, mix_ref, or_ref, oi_ref):
    xr = xr_ref[...]
    xi = xi_ref[...]
    wr = wr_ref[...]
    wi = wi_ref[...]

    yr = xr * wr - xi * wi            # masked complex spectral multiply
    yi = xr * wi + xi * wr

    mix = mix_ref[...]                # (C_out, C_in)
    c_in = yr.shape[0]
    accr = jnp.zeros_like(yr)
    acci = jnp.zeros_like(yi)
    for c in range(c_in):             # static unroll (C == 4)
        col = mix[:, c:c + 1]         # (C_out, 1)
        accr = accr + col * yr[c:c + 1, :]
        acci = acci + col * yi[c:c + 1, :]
    or_ref[...] = accr
    oi_ref[...] = acci


def _spectral_sigma(w2d, iters=30):
    """Deterministic power iteration emulating torch spectral_norm's sigma.

    TODO(synk): torch.nn.utils.spectral_norm keeps a persistent *random* u and
    does one iteration per forward, so PyTorch parity is approximate.
    """
    n = w2d.shape[0]
    u = jnp.cos(jnp.arange(n, dtype=jnp.float32) + 0.5)   # fixed, non-uniform start
    u = u / jnp.linalg.norm(u)
    v = jnp.zeros((w2d.shape[1],), jnp.float32)
    for _ in range(iters):
        v = w2d.T @ u
        v = v / (jnp.linalg.norm(v) + 1e-12)
        u = w2d @ v
        u = u / (jnp.linalg.norm(u) + 1e-12)
    return u @ (w2d @ v)


def ds_conv_spectral_fno(x, mags, phases, useable_mask, conv_w, conv_b):
    B, C, H, W = x.shape
    Wf = W // 2 + 1
    F = H * Wf
    out_dtype = x.dtype

    xf = x.astype(jnp.float32)

    # TODO(synk): rfft2/irfft2 have no Pallas TPU equivalent; kept as XLA FFTs.
    x_ft = jnp.fft.rfft2(xf, norm="ortho")                     # (B, C, H, Wf) c64
    xr = jnp.real(x_ft).reshape(B, C, F)
    xi = jnp.imag(x_ft).reshape(B, C, F)

    # ---- Parameter-sized, grid-invariant preprocessing (one-off) -----------
    s = jax.nn.sigmoid(mags.astype(jnp.float32))               # (1, C, H, Wf)
    msk = useable_mask.astype(jnp.float32)[None, None, :, :]   # (1, 1, H, Wf)
    wr = (s * jnp.cos(phases.astype(jnp.float32)) * msk).reshape(C, F)
    wi = (s * jnp.sin(phases.astype(jnp.float32)) * msk).reshape(C, F)

    w2d = conv_w.reshape(C, C).astype(jnp.float32)
    mix = w2d / _spectral_sigma(w2d)                           # weight / sigma_max
    bias = conv_b.astype(jnp.float32)

    # ---- Fused Pallas kernel: spectral multiply + channel mix --------------
    x_blk = pl.BlockSpec((None, C, F), lambda b: (b, 0, 0))    # per-batch (C, F)
    w_blk = pl.BlockSpec((C, F), lambda b: (0, 0))             # shared across batch
    m_blk = pl.BlockSpec((C, C), lambda b: (0, 0))             # shared across batch

    yr, yi = pl.pallas_call(
        _spectral_mix_kernel,
        out_shape=(jax.ShapeDtypeStruct((B, C, F), jnp.float32),
                   jax.ShapeDtypeStruct((B, C, F), jnp.float32)),
        grid=(B,),
        in_specs=[x_blk, x_blk, w_blk, w_blk, m_blk],
        out_specs=(x_blk, x_blk),
        compiler_params=pltpu.CompilerParams(
            dimension_semantics=("parallel",)),
    )(xr, xi, wr, wi, mix)

    y_ft = lax.complex(yr, yi).reshape(B, C, H, Wf)
    y = jnp.fft.irfft2(y_ft, s=(H, W), norm="ortho")           # (B, C, H, W) f32

    # Bias does not commute with the masked spectral multiply: add after irfft2.
    y = y + bias[None, :, None, None]
    return y.astype(out_dtype)


# Pure-JAX reference (same math as the PyTorch forward).
def _reference(x, mags, phases, useable_mask, conv_w, conv_b):
    B, C, H, W = x.shape
    xf = x.astype(jnp.float32)
    x_ft = jnp.fft.rfft2(xf, norm="ortho")
    weight = jax.nn.sigmoid(mags) * (jnp.cos(phases) + 1j * jnp.sin(phases))
    x_ft = jnp.where(useable_mask[None, None, :, :], x_ft * weight,
                     jnp.zeros((), x_ft.dtype))
    y = jnp.fft.irfft2(x_ft, s=(H, W), norm="ortho")
    w2d = conv_w.reshape(C, C).astype(jnp.float32)
    wn = w2d / _spectral_sigma(w2d)
    out = jnp.einsum("oc,bchw->bohw", wn, y, precision=lax.Precision.HIGHEST)
    out = out + conv_b[None, :, None, None]
    return out.astype(x.dtype)


if __name__ == "__main__":
    B, C, H, W = 2, 4, 16, 16          # batch=2, in_channels=4, grid_size=(16,16)
    ratio = 1.0
    Wf = W // 2 + 1

    key = jax.random.PRNGKey(0)
    kx, km, kp, kw, kb = jax.random.split(key, 5)
    x = jax.random.normal(kx, (B, C, H, W), jnp.float32)
    mags = jax.random.normal(km, (1, C, H, Wf), jnp.float32)
    phases = jax.random.normal(kp, (1, C, H, Wf), jnp.float32)
    conv_w = jax.random.normal(kw, (C, C, 1, 1), jnp.float32) * 0.5
    conv_b = jax.random.normal(kb, (C,), jnp.float32) * 0.1

    # useable_inds buffer: keep wavenumbers with radius <= (W // 2) * ratio
    kfreq = jnp.fft.rfftfreq(W) * W
    circ = jnp.fft.fftfreq(H) * H
    waves = jnp.sqrt(kfreq[None, :] ** 2 + circ[:, None] ** 2)
    useable_mask = waves <= (W // 2) * ratio           # (H, Wf) bool

    fwd = jax.jit(ds_conv_spectral_fno)
    out = fwd(x, mags, phases, useable_mask, conv_w, conv_b)
    out = jax.block_until_ready(out)

    ref = _reference(x, mags, phases, useable_mask, conv_w, conv_b)
    ref = jax.block_until_ready(ref)

    assert out.shape == (B, C, H, W), out.shape
    assert out.dtype == jnp.float32, out.dtype
    max_err = float(jnp.max(jnp.abs(out - ref)))
    assert max_err < 1e-4, f"max |pallas - reference| = {max_err}"

    print("KERNEL_OK")
</pallas_src>

<mosaic_0001>
module attributes {stable_mosaic.version = 11 : i64} {
  func.func @_spectral_mix_kernel(%arg0: i32, %arg1: memref<1x4x144xf32, #tpu.memory_space<vmem>>, %arg2: memref<1x4x144xf32, #tpu.memory_space<vmem>>, %arg3: memref<4x144xf32, #tpu.memory_space<vmem>>, %arg4: memref<4x144xf32, #tpu.memory_space<vmem>>, %arg5: memref<4x4xf32, #tpu.memory_space<vmem>>, %arg6: memref<1x4x144xf32, #tpu.memory_space<vmem>>, %arg7: memref<1x4x144xf32, #tpu.memory_space<vmem>>) attributes {dimension_semantics = [#tpu.dimension_semantics<parallel>], iteration_bounds = array<i64: 2>, scalar_prefetch = 0 : i64, scratch_operands = 0 : i64, tpu.core_type = #tpu.core_type<tc>, window_params = [{transform_indices = @transform_0, window_bounds = array<i64: 1, 4, 144>}, {transform_indices = @transform_1, window_bounds = array<i64: 1, 4, 144>}, {pipeline_mode = #tpu.pipeline_mode<synchronous>, transform_indices = @transform_2, window_bounds = array<i64: 4, 144>}, {pipeline_mode = #tpu.pipeline_mode<synchronous>, transform_indices = @transform_3, window_bounds = array<i64: 4, 144>}, {pipeline_mode = #tpu.pipeline_mode<synchronous>, transform_indices = @transform_4, window_bounds = array<i64: 4, 4>}, {transform_indices = @transform_5, window_bounds = array<i64: 1, 4, 144>}, {transform_indices = @transform_6, window_bounds = array<i64: 1, 4, 144>}]} {
    %c0 = arith.constant 0 : index
    %c0_0 = arith.constant 0 : index
    %c0_1 = arith.constant 0 : index
    %0 = vector.load %arg1[%c0, %c0_0, %c0_1] : memref<1x4x144xf32, #tpu.memory_space<vmem>>, vector<1x4x144xf32>
    %1 = vector.shape_cast %0 : vector<1x4x144xf32> to vector<4x144xf32>
    %c0_2 = arith.constant 0 : index
    %c0_3 = arith.constant 0 : index
    %c0_4 = arith.constant 0 : index
    %2 = vector.load %arg2[%c0_2, %c0_3, %c0_4] : memref<1x4x144xf32, #tpu.memory_space<vmem>>, vector<1x4x144xf32>
    %3 = vector.shape_cast %2 : vector<1x4x144xf32> to vector<4x144xf32>
    %c0_5 = arith.constant 0 : index
    %c0_6 = arith.constant 0 : index
    %4 = vector.load %arg3[%c0_5, %c0_6] : memref<4x144xf32, #tpu.memory_space<vmem>>, vector<4x144xf32>
    %c0_7 = arith.constant 0 : index
    %c0_8 = arith.constant 0 : index
    %5 = vector.load %arg4[%c0_7, %c0_8] : memref<4x144xf32, #tpu.memory_space<vmem>>, vector<4x144xf32>
    %6 = arith.mulf %1, %4 : vector<4x144xf32>
    %7 = arith.mulf %3, %5 : vector<4x144xf32>
    %8 = arith.subf %6, %7 : vector<4x144xf32>
    %9 = arith.mulf %1, %5 : vector<4x144xf32>
    %10 = arith.mulf %3, %4 : vector<4x144xf32>
    %11 = arith.addf %9, %10 : vector<4x144xf32>
    %c0_9 = arith.constant 0 : index
    %c0_10 = arith.constant 0 : index
    %12 = vector.load %arg5[%c0_9, %c0_10] : memref<4x4xf32, #tpu.memory_space<vmem>>, vector<4x4xf32>
    %cst = arith.constant 0.000000e+00 : f32
    %13 = vector.broadcast %cst : f32 to vector<4x144xf32>
    %cst_11 = arith.constant 0.000000e+00 : f32
    %14 = vector.broadcast %cst_11 : f32 to vector<4x144xf32>
    %15 = vector.extract_strided_slice %12 {offsets = [0, 0], sizes = [4, 1], strides = [1, 1]} : vector<4x4xf32> to vector<4x1xf32>
    %16 = vector.extract_strided_slice %8 {offsets = [0, 0], sizes = [1, 144], strides = [1, 1]} : vector<4x144xf32> to vector<1x144xf32>
    %17 = vector.broadcast %15 : vector<4x1xf32> to vector<4x144xf32>
    %18 = vector.broadcast %16 : vector<1x144xf32> to vector<4x144xf32>
    %19 = arith.mulf %17, %18 : vector<4x144xf32>
    %20 = arith.addf %13, %19 : vector<4x144xf32>
    %21 = vector.extract_strided_slice %11 {offsets = [0, 0], sizes = [1, 144], strides = [1, 1]} : vector<4x144xf32> to vector<1x144xf32>
    %22 = vector.broadcast %15 : vector<4x1xf32> to vector<4x144xf32>
    %23 = vector.broadcast %21 : vector<1x144xf32> to vector<4x144xf32>
    %24 = arith.mulf %22, %23 : vector<4x144xf32>
    %25 = arith.addf %14, %24 : vector<4x144xf32>
    %26 = vector.extract_strided_slice %12 {offsets = [0, 1], sizes = [4, 1], strides = [1, 1]} : vector<4x4xf32> to vector<4x1xf32>
    %27 = vector.extract_strided_slice %8 {offsets = [1, 0], sizes = [1, 144], strides = [1, 1]} : vector<4x144xf32> to vector<1x144xf32>
    %28 = vector.broadcast %26 : vector<4x1xf32> to vector<4x144xf32>
    %29 = vector.broadcast %27 : vector<1x144xf32> to vector<4x144xf32>
    %30 = arith.mulf %28, %29 : vector<4x144xf32>
    %31 = arith.addf %20, %30 : vector<4x144xf32>
    %32 = vector.extract_strided_slice %11 {offsets = [1, 0], sizes = [1, 144], strides = [1, 1]} : vector<4x144xf32> to vector<1x144xf32>
    %33 = vector.broadcast %26 : vector<4x1xf32> to vector<4x144xf32>
    %34 = vector.broadcast %32 : vector<1x144xf32> to vector<4x144xf32>
    %35 = arith.mulf %33, %34 : vector<4x144xf32>
    %36 = arith.addf %25, %35 : vector<4x144xf32>
    %37 = vector.extract_strided_slice %12 {offsets = [0, 2], sizes = [4, 1], strides = [1, 1]} : vector<4x4xf32> to vector<4x1xf32>
    %38 = vector.extract_strided_slice %8 {offsets = [2, 0], sizes = [1, 144], strides = [1, 1]} : vector<4x144xf32> to vector<1x144xf32>
    %39 = vector.broadcast %37 : vector<4x1xf32> to vector<4x144xf32>
    %40 = vector.broadcast %38 : vector<1x144xf32> to vector<4x144xf32>
    %41 = arith.mulf %39, %40 : vector<4x144xf32>
    %42 = arith.addf %31, %41 : vector<4x144xf32>
    %43 = vector.extract_strided_slice %11 {offsets = [2, 0], sizes = [1, 144], strides = [1, 1]} : vector<4x144xf32> to vector<1x144xf32>
    %44 = vector.broadcast %37 : vector<4x1xf32> to vector<4x144xf32>
    %45 = vector.broadcast %43 : vector<1x144xf32> to vector<4x144xf32>
    %46 = arith.mulf %44, %45 : vector<4x144xf32>
    %47 = arith.addf %36, %46 : vector<4x144xf32>
    %48 = vector.extract_strided_slice %12 {offsets = [0, 3], sizes = [4, 1], strides = [1, 1]} : vector<4x4xf32> to vector<4x1xf32>
    %49 = vector.extract_strided_slice %8 {offsets = [3, 0], sizes = [1, 144], strides = [1, 1]} : vector<4x144xf32> to vector<1x144xf32>
    %50 = vector.broadcast %48 : vector<4x1xf32> to vector<4x144xf32>
    %51 = vector.broadcast %49 : vector<1x144xf32> to vector<4x144xf32>
    %52 = arith.mulf %50, %51 : vector<4x144xf32>
    %53 = arith.addf %42, %52 : vector<4x144xf32>
    %54 = vector.extract_strided_slice %11 {offsets = [3, 0], sizes = [1, 144], strides = [1, 1]} : vector<4x144xf32> to vector<1x144xf32>
    %55 = vector.broadcast %48 : vector<4x1xf32> to vector<4x144xf32>
    %56 = vector.broadcast %54 : vector<1x144xf32> to vector<4x144xf32>
    %57 = arith.mulf %55, %56 : vector<4x144xf32>
    %58 = arith.addf %47, %57 : vector<4x144xf32>
    %c0_12 = arith.constant 0 : index
    %c0_13 = arith.constant 0 : index
    %c0_14 = arith.constant 0 : index
    %59 = vector.load %arg6[%c0_12, %c0_13, %c0_14] : memref<1x4x144xf32, #tpu.memory_space<vmem>>, vector<1x4x144xf32>
    %60 = vector.shape_cast %59 : vector<1x4x144xf32> to vector<4x144xf32>
    %61 = vector.shape_cast %53 : vector<4x144xf32> to vector<1x4x144xf32>
    tpu.vector_store %arg6[%c0_12, %c0_13, %c0_14], %61 {strides = array<i32>} : memref<1x4x144xf32, #tpu.memory_space<vmem>>, vector<1x4x144xf32>,
    %c0_15 = arith.constant 0 : index
    %c0_16 = arith.constant 0 : index
    %c0_17 = arith.constant 0 : index
    %62 = vector.load %arg7[%c0_15, %c0_16, %c0_17] : memref<1x4x144xf32, #tpu.memory_space<vmem>>, vector<1x4x144xf32>
    %63 = vector.shape_cast %62 : vector<1x4x144xf32> to vector<4x144xf32>
    %64 = vector.shape_cast %58 : vector<4x144xf32> to vector<1x4x144xf32>
    tpu.vector_store %arg7[%c0_15, %c0_16, %c0_17], %64 {strides = array<i32>} : memref<1x4x144xf32, #tpu.memory_space<vmem>>, vector<1x4x144xf32>,
    return
  }
  func.func @transform_0(%arg0: i32) -> (i32, i32, i32) {
    %c0_i32 = arith.constant 0 : i32
    %c0_i32_0 = arith.constant 0 : i32
    %c0_i32_1 = arith.constant 0 : i32
    return %arg0, %c0_i32, %c0_i32_0 : i32, i32, i32
  }
  func.func @transform_1(%arg0: i32) -> (i32, i32, i32) {
    %c0_i32 = arith.constant 0 : i32
    %c0_i32_0 = arith.constant 0 : i32
    %c0_i32_1 = arith.constant 0 : i32
    return %arg0, %c0_i32, %c0_i32_0 : i32, i32, i32
  }
  func.func @transform_2(%arg0: i32) -> (i32, i32) {
    %c0_i32 = arith.constant 0 : i32
    %c0_i32_0 = arith.constant 0 : i32
    %c0_i32_1 = arith.constant 0 : i32
    return %c0_i32, %c0_i32_0 : i32, i32
  }
  func.func @transform_3(%arg0: i32) -> (i32, i32) {
    %c0_i32 = arith.constant 0 : i32
    %c0_i32_0 = arith.constant 0 : i32
    %c0_i32_1 = arith.constant 0 : i32
    return %c0_i32, %c0_i32_0 : i32, i32
  }
  func.func @transform_4(%arg0: i32) -> (i32, i32) {
    %c0_i32 = arith.constant 0 : i32
    %c0_i32_0 = arith.constant 0 : i32
    %c0_i32_1 = arith.constant 0 : i32
    return %c0_i32, %c0_i32_0 : i32, i32
  }
  func.func @transform_5(%arg0: i32) -> (i32, i32, i32) {
    %c0_i32 = arith.constant 0 : i32
    %c0_i32_0 = arith.constant 0 : i32
    %c0_i32_1 = arith.constant 0 : i32
    return %arg0, %c0_i32, %c0_i32_0 : i32, i32, i32
  }
  func.func @transform_6(%arg0: i32) -> (i32, i32, i32) {
    %c0_i32 = arith.constant 0 : i32
    %c0_i32_0 = arith.constant 0 : i32
    %c0_i32_1 = arith.constant 0 : i32
    return %arg0, %c0_i32, %c0_i32_0 : i32, i32, i32
  }
}

</mosaic_0001>

<llo_original>
// kernel: ds_conv_spectral_fno.1
$region0: #{ds_conv_spectral_fno.1}
  #allocation0 [shape = 'u32[]', space=smem, size = 0x4, offset = 0x4, fixed_abs, tag = 'smem constant byte address 0x4 - core index']
  #allocation1 [shape = 'u32[72,128]{1,0:T(1,128)}', space=vmem, size = 0x9000, scoped, tag = 'internal scratch']
  %s0 = inlined_call_operand.vmem [shape: f32[2,4,144], index: 0, kind: input, shape index: {}]
  %s1 = inlined_call_operand.vmem [shape: f32[2,4,144], index: 1, kind: input, shape index: {}]
  %s2 = inlined_call_operand.vmem [shape: f32[4,144], index: 2, kind: input, shape index: {}]
  %s3 = inlined_call_operand.vmem [shape: f32[4,144], index: 3, kind: input, shape index: {}]
  %s4 = inlined_call_operand.vmem [shape: f32[4,4], index: 4, kind: input, shape index: {}]
  %s5 = inlined_call_operand.vmem [shape: f32[2,4,144], index: 5, kind: output, shape index: {0}]
  %s6 = inlined_call_operand.vmem [shape: f32[2,4,144], index: 6, kind: output, shape index: {1}]
  %7 = xla_tuple %s5, %s6
  %s8 = sld [smem:[#allocation0]]
  $region61: #{ds_conv_spectral_fno.1} parent=0
    _
  %s10 = ssub.s32 1, %s8
  %s11 = scalar_select 0, %s10, %s8
  loop: start=0, step=1, limit=4
  $region2: #{ds_conv_spectral_fno.1} parent=0 // loop_pre_header
    _
  $region3: #{ds_conv_spectral_fno.1} parent=0 // loop_header
    %s13 = sphi 0, %s17
    %p14 = scmp.ge.s32.totalorder %s13, 4
    %s23 = sphi 0, %s25
    %s26 = sphi 0, %s23
    %s27 = sphi 0, %s26
    %s43 = sphi 0, %s27
    %s49 = sphi 0, %s51
    %s52 = sphi 0, %s49
    %s53 = sphi 0, %s52
    %s69 = sphi 0, %s53
    %s73 = sphi 0, %s73
    %s75 = sphi 0, %s73
    %s76 = sphi 0, %s75
    %s90 = sphi 0, %s76
    %s94 = sphi 0, %s94
    %s96 = sphi 0, %s94
    %s97 = sphi 0, %s96
    %s111 = sphi 0, %s97
    %s115 = sphi 0, %s115
    %s117 = sphi 0, %s115
    %s118 = sphi 0, %s117
    %s132 = sphi 0, %s118
    %s138 = sphi 0, %s140
    %s141 = sphi 0, %s138
    %s142 = sphi 0, %s141
    %s158 = sphi 0, %s142
    %s164 = sphi 0, %s166
    %s167 = sphi 0, %s164
    %s168 = sphi 0, %s167
    %s184 = sphi 0, %s168
  $region4: #{ds_conv_spectral_fno.1} parent=0 // loop_header_branch
    %16 = sbr.rel (%p14) target = $region8
  $region5: #{ds_conv_spectral_fno.1} parent=0 // loop_body
    %s18 = ssub.s32 %s13, 1
    %s19 = ssub.s32 %s13, 2
    %s20 = sadd.s32 %s13, 1
    %s21 = ssub.s32 %s13, %s20
    %p22 = scmp.eq.s32.totalorder %s21, 0
    %s24 = sadd.s32 %s23, 1
    %s25 = scalar_select %p22, %s23, %s24
    %p28 = pneg %p22
    %p29 = scmp.eq.s32.totalorder %s13, 1
    %p30 = por %p28, %p29
    %p31 = scmp.ne.s32.totalorder %s23, %s26
    %p32 = scmp.eq.s32.totalorder %s13, 0
    %p33 = por %p31, %p32
    %p34 = scmp.ne.s32.totalorder %s23, %s26
    %p35 = scmp.eq.s32.totalorder %s18, 1
    %p36 = por %p34, %p35
    %p37 = scmp.ne.s32.totalorder %s26, %s27
    %p38 = scmp.eq.s32.totalorder %s18, 0
    %p39 = por %p37, %p38
    %p40 = scmp.ne.s32.totalorder %s26, %s27
    %p41 = scmp.eq.s32.totalorder %s19, 1
    %p42 = por %p40, %p41
    %p44 = scmp.ne.s32.totalorder %s27, %s43
    %p45 = scmp.eq.s32.totalorder %s19, 0
    %p46 = por %p44, %p45
    %s47 = ssub.s32 %s13, %s20
    %p48 = scmp.eq.s32.totalorder %s47, 0
    %s50 = sadd.s32 %s49, 1
    %s51 = scalar_select %p48, %s49, %s50
    %p54 = pneg %p48
    %p55 = scmp.eq.s32.totalorder %s13, 1
    %p56 = por %p54, %p55
    %p57 = scmp.ne.s32.totalorder %s49, %s52
    %p58 = scmp.eq.s32.totalorder %s13, 0
    %p59 = por %p57, %p58
    %p60 = scmp.ne.s32.totalorder %s49, %s52
    %p61 = scmp.eq.s32.totalorder %s18, 1
    %p62 = por %p60, %p61
    %p63 = scmp.ne.s32.totalorder %s52, %s53
    %p64 = scmp.eq.s32.totalorder %s18, 0
    %p65 = por %p63, %p64
    %p66 = scmp.ne.s32.totalorder %s52, %s53
    %p67 = scmp.eq.s32.totalorder %s19, 1
    %p68 = por %p66, %p67
    %p70 = scmp.ne.s32.totalorder %s53, %s69
    %p71 = scmp.eq.s32.totalorder %s19, 0
    %p72 = por %p70, %p71
    %s74 = sadd.s32 %s73, 1
    %p77 = scmp.eq.s32.totalorder %s13, 1
    %p78 = scmp.ne.s32.totalorder %s73, %s75
    %p79 = scmp.eq.s32.totalorder %s13, 0
    %p80 = por %p78, %p79
    %p81 = scmp.ne.s32.totalorder %s73, %s75
    %p82 = scmp.eq.s32.totalorder %s18, 1
    %p83 = por %p81, %p82
    %p84 = scmp.ne.s32.totalorder %s75, %s76
    %p85 = scmp.eq.s32.totalorder %s18, 0
    %p86 = por %p84, %p85
    %p87 = scmp.ne.s32.totalorder %s75, %s76
    %p88 = scmp.eq.s32.totalorder %s19, 1
    %p89 = por %p87, %p88
    %p91 = scmp.ne.s32.totalorder %s76, %s90
    %p92 = scmp.eq.s32.totalorder %s19, 0
    %p93 = por %p91, %p92
    %s95 = sadd.s32 %s94, 1
    %p98 = scmp.eq.s32.totalorder %s13, 1
    %p99 = scmp.ne.s32.totalorder %s94, %s96
    %p100 = scmp.eq.s32.totalorder %s13, 0
    %p101 = por %p99, %p100
    %p102 = scmp.ne.s32.totalorder %s94, %s96
    %p103 = scmp.eq.s32.totalorder %s18, 1
    %p104 = por %p102, %p103
    %p105 = scmp.ne.s32.totalorder %s96, %s97
    %p106 = scmp.eq.s32.totalorder %s18, 0
    %p107 = por %p105, %p106
    %p108 = scmp.ne.s32.totalorder %s96, %s97
    %p109 = scmp.eq.s32.totalorder %s19, 1
    %p110 = por %p108, %p109
    %p112 = scmp.ne.s32.totalorder %s97, %s111
    %p113 = scmp.eq.s32.totalorder %s19, 0
    %p114 = por %p112, %p113
    %s116 = sadd.s32 %s115, 1
    %p119 = scmp.eq.s32.totalorder %s13, 1
    %p120 = scmp.ne.s32.totalorder %s115, %s117
    %p121 = scmp.eq.s32.totalorder %s13, 0
    %p122 = por %p120, %p121
    %p123 = scmp.ne.s32.totalorder %s115, %s117
    %p124 = scmp.eq.s32.totalorder %s18, 1
    %p125 = por %p123, %p124
    %p126 = scmp.ne.s32.totalorder %s117, %s118
    %p127 = scmp.eq.s32.totalorder %s18, 0
    %p128 = por %p126, %p127
    %p129 = scmp.ne.s32.totalorder %s117, %s118
    %p130 = scmp.eq.s32.totalorder %s19, 1
    %p131 = por %p129, %p130
    %p133 = scmp.ne.s32.totalorder %s118, %s132
    %p134 = scmp.eq.s32.totalorder %s19, 0
    %p135 = por %p133, %p134
    %s136 = ssub.s32 %s13, %s20
    %p137 = scmp.eq.s32.totalorder %s136, 0
    %s139 = sadd.s32 %s138, 1
    %s140 = scalar_select %p137, %s138, %s139
    %p143 = pneg %p137
    %p144 = scmp.eq.s32.totalorder %s13, 1
    %p145 = por %p143, %p144
    %p146 = scmp.ne.s32.totalorder %s138, %s141
    %p147 = scmp.eq.s32.totalorder %s13, 0
    %p148 = por %p146, %p147
    %p149 = scmp.ne.s32.totalorder %s138, %s141
    %p150 = scmp.eq.s32.totalorder %s18, 1
    %p151 = por %p149, %p150
    %p152 = scmp.ne.s32.totalorder %s141, %s142
    %p153 = scmp.eq.s32.totalorder %s18, 0
    %p154 = por %p152, %p153
    %p155 = scmp.ne.s32.totalorder %s141, %s142
    %p156 = scmp.eq.s32.totalorder %s19, 1
    %p157 = por %p155, %p156
    %p159 = scmp.ne.s32.totalorder %s142, %s158
    %p160 = scmp.eq.s32.totalorder %s19, 0
    %p161 = por %p159, %p160
    %s162 = ssub.s32 %s13, %s20
    %p163 = scmp.eq.s32.totalorder %s162, 0
    %s165 = sadd.s32 %s164, 1
    %s166 = scalar_select %p163, %s164, %s165
    %p169 = pneg %p163
    %p170 = scmp.eq.s32.totalorder %s13, 1
    %p171 = por %p169, %p170
    %p172 = scmp.ne.s32.totalorder %s164, %s167
    %p173 = scmp.eq.s32.totalorder %s13, 0
    %p174 = por %p172, %p173
    %p175 = scmp.ne.s32.totalorder %s164, %s167
    %p176 = scmp.eq.s32.totalorder %s18, 1
    %p177 = por %p175, %p176
    %p178 = scmp.ne.s32.totalorder %s167, %s168
    %p179 = scmp.eq.s32.totalorder %s18, 0
    %p180 = por %p178, %p179
    %p181 = scmp.ne.s32.totalorder %s167, %s168
    %p182 = scmp.eq.s32.totalorder %s19, 1
    %p183 = por %p181, %p182
    %p185 = scmp.ne.s32.totalorder %s168, %s184
    %p186 = scmp.eq.s32.totalorder %s19, 0
    %p187 = por %p185, %p186
    %p188 = scmp.le.s32.totalorder 1, %s13
    %p189 = scmp.lt.s32.totalorder %s13, 3
    %p190 = pnand %p188, %p189
    %p191 = pneg %p190
    // Predicated region
    $region9: #{ds_conv_spectral_fno.1} parent=5 // pred_check
      _
    $region10: #{ds_conv_spectral_fno.1} parent=5 // pred_check_branch
      %193 = sbr.rel (%p190) target = $region12
    $region11: #{ds_conv_spectral_fno.1} parent=5 // pred_region
      %s194 = ssub.s32 %s13, 1
      // Predicated region
      $region13: #{ds_conv_spectral_fno.1} parent=11 // pred_check
        %p195 = pneg %p86
      $region14: #{ds_conv_spectral_fno.1} parent=11 // pred_check_branch
        %197 = sbr.rel (%p195) target = $region16
      $region15: #{ds_conv_spectral_fno.1} parent=11 // pred_region
        _
      $region16: #{ds_conv_spectral_fno.1} parent=11 // pred_fallthru
        _
      // Predicated region
      $region17: #{ds_conv_spectral_fno.1} parent=11 // pred_check
        %p198 = pneg %p107
      $region18: #{ds_conv_spectral_fno.1} parent=11 // pred_check_branch
        %200 = sbr.rel (%p198) target = $region20
      $region19: #{ds_conv_spectral_fno.1} parent=11 // pred_region
        _
      $region20: #{ds_conv_spectral_fno.1} parent=11 // pred_fallthru
        _
      // Predicated region
      $region21: #{ds_conv_spectral_fno.1} parent=11 // pred_check
        %p201 = pneg %p128
      $region22: #{ds_conv_spectral_fno.1} parent=11 // pred_check_branch
        %203 = sbr.rel (%p201) target = $region24
      $region23: #{ds_conv_spectral_fno.1} parent=11 // pred_region
        _
      $region24: #{ds_conv_spectral_fno.1} parent=11 // pred_fallthru
        _
    $region12: #{ds_conv_spectral_fno.1} parent=5 // pred_fallthru
      _
    %p204 = scmp.lt.s32.totalorder %s13, 2
    // Predicated region
    $region25: #{ds_conv_spectral_fno.1} parent=5 // pred_check
      %p205 = pneg %p204
    $region26: #{ds_conv_spectral_fno.1} parent=5 // pred_check_branch
      %207 = sbr.rel (%p205) target = $region28
    $region27: #{ds_conv_spectral_fno.1} parent=5 // pred_region
      // Predicated region
      $region29: #{ds_conv_spectral_fno.1} parent=27 // pred_check
        %p208 = pneg %p33
      $region30: #{ds_conv_spectral_fno.1} parent=27 // pred_check_branch
        %210 = sbr.rel (%p208) target = $region32
      $region31: #{ds_conv_spectral_fno.1} parent=27 // pred_region
        %p211 = scmp.lt.s32.totalorder %s13, 1
        %s212 = scalar_select %p211, %s13, 1
        %s213 = smul.addr %s212, 2
        %s214 = smul.addr %s213, 4
        %s215 = scalar_lea.vmem %s0, %s214
      $region32: #{ds_conv_spectral_fno.1} parent=27 // pred_fallthru
        _
      // Predicated region
      $region33: #{ds_conv_spectral_fno.1} parent=27 // pred_check
        %p216 = pneg %p59
      $region34: #{ds_conv_spectral_fno.1} parent=27 // pred_check_branch
        %218 = sbr.rel (%p216) target = $region36
      $region35: #{ds_conv_spectral_fno.1} parent=27 // pred_region
        %p219 = scmp.lt.s32.totalorder %s13, 1
        %s220 = scalar_select %p219, %s13, 1
        %s221 = smul.addr %s220, 2
        %s222 = smul.addr %s221, 4
        %s223 = scalar_lea.vmem %s1, %s222
      $region36: #{ds_conv_spectral_fno.1} parent=27 // pred_fallthru
        _
    $region28: #{ds_conv_spectral_fno.1} parent=5 // pred_fallthru
      _
    %p224 = scmp.le.s32.totalorder 1, %s13
    %p225 = scmp.lt.s32.totalorder %s13, 3
    %p226 = pnand %p224, %p225
    %p227 = pneg %p226
    // Predicated region
    $region37: #{ds_conv_spectral_fno.1} parent=5 // pred_check
      _
    $region38: #{ds_conv_spectral_fno.1} parent=5 // pred_check_branch
      %229 = sbr.rel (%p226) target = $region40
    $region39: #{ds_conv_spectral_fno.1} parent=5 // pred_region
      %s230 = ssub.s32 %s13, 1
      %p231 = scmp.lt.s32.totalorder %s18, 1
      %s232 = scalar_select %p231, %s18, 1
      %s233 = smul.addr %s232, 2
      %s234 = smul.addr %s233, 4
      %s235 = scalar_lea.vmem %s0, %s234
      %p236 = pneg %p39
      %p237 = pneg %p36
      %p238 = scmp.lt.s32.totalorder %s18, 1
      %s239 = scalar_select %p238, %s18, 1
      %s240 = smul.addr %s239, 2
      %s241 = smul.addr %s240, 4
      %s242 = scalar_lea.vmem %s1, %s241
      %p243 = pneg %p65
      %p244 = pneg %p62
      %p245 = pneg %p86
      %p246 = pneg %p83
      %p247 = pneg %p107
      %p248 = pneg %p104
      %p249 = pneg %p128
      %p250 = pneg %p125
      %p251 = pneg %p154
      %p252 = pneg %p151
      %p253 = scmp.lt.s32.totalorder %s18, 1
      %s254 = scalar_select %p253, %s18, 1
      %s255 = smul.addr %s254, 2
      %s256 = smul.addr %s255, 4
      %s257 = scalar_lea.vmem %s5, %s256
      %p258 = pneg %p180
      %p259 = pneg %p177
      %p260 = scmp.lt.s32.totalorder %s18, 1
      %s261 = scalar_select %p260, %s18, 1
      %s262 = smul.addr %s261, 2
      %s263 = smul.addr %s262, 4
      %s264 = scalar_lea.vmem %s6, %s263
      %p265 = scmp.lt.s32.totalorder %s18, 1
      %s266 = scalar_select %p265, %s18, 1
      %s267 = smul.addr %s266, 2
      %s268 = smul.addr %s267, 4
      %s269 = scalar_lea.vmem %s0, %s268
      %p270 = scmp.lt.s32.totalorder %s18, 1
      %s271 = scalar_select %p270, %s18, 1
      %s272 = smul.addr %s271, 2
      %s273 = smul.addr %s272, 4
      %s274 = scalar_lea.vmem %s1, %s273
      %p275 = scmp.lt.s32.totalorder %s18, 1
      %s276 = scalar_select %p275, %s18, 1
      %s277 = smul.addr %s276, 2
      %s278 = smul.addr %s277, 4
      %s279 = scalar_lea.vmem %s5, %s278
      %p280 = scmp.lt.s32.totalorder %s18, 1
      %s281 = scalar_select %p280, %s18, 1
      %s282 = smul.addr %s281, 2
      %s283 = smul.addr %s282, 4
      %s284 = scalar_lea.vmem %s6, %s283
      %v285 = vld [vmem:[%s269] sm:$0xff]
      %v286 = vld [vmem:[%s274] sm:$0xff]
      %v287 = vld [vmem:[%s2] sm:$0xff]
      %v288 = vld [vmem:[%s3] sm:$0xff]
      %v289 = vmul.f32 %v285, %v287
      %v290 = vmul.f32 %v286, %v288
      %v291 = vsub.f32 %v289, %v290
      %v292 = vmul.f32 %v285, %v288
      %v293 = vmul.f32 %v286, %v287
      %v294 = vadd.f32 %v292, %v293
      %v295 = vld [vmem:[%s4] sm:$0xf]
      %297 = vset.pattern.permute.xlu0 0
      %298 = vperm.xlu0 %297, %v295
      %v299 = vpop.permute.xlu0 %298
      %v302 = vperm.slane %v291, 0
      %v303 = vperm.slane %v291, 4
      %v306 = vperm.slane %v302, 0
      %v307 = vperm.slane %v303, 0
      %v308 = vmul.f32 %v299, %v306
      %v309 = vmul.f32 %v299, %v307
      %v310 = vadd.f32 %v308, 0.0
      %v311 = vadd.f32 %v309, 0.0
      %v313 = vperm.slane %v294, 0
      %v314 = vperm.slane %v294, 4
      %v317 = vperm.slane %v313, 0
      %v318 = vperm.slane %v314, 0
      %v319 = vmul.f32 %v299, %v317
      %v320 = vmul.f32 %v299, %v318
      %v321 = vadd.f32 %v319, 0.0
      %v322 = vadd.f32 %v320, 0.0
      %323 = vset.pattern.permute.xlu0 1
      %324 = vperm.xlu0 %323, %v295
      %v325 = vpop.permute.xlu0 %324
      %v327 = vperm.slane %v291, 1
      %v328 = vperm.slane %v291, 5
      %v331 = vperm.slane %v327, 1
      %v332 = vperm.slane %v328, 1
      %v333 = vmul.f32 %v325, %v331
      %v334 = vmul.f32 %v325, %v332
      %v335 = vadd.f32 %v310, %v333
      %v336 = vadd.f32 %v311, %v334
      %v337 = vperm.slane %v294, 1
      %v338 = vperm.slane %v294, 5
      %v341 = vperm.slane %v337, 1
      %v342 = vperm.slane %v338, 1
      %v343 = vmul.f32 %v325, %v341
      %v344 = vmul.f32 %v325, %v342
      %v345 = vadd.f32 %v321, %v343
      %v346 = vadd.f32 %v322, %v344
      %347 = vset.pattern.permute.xlu0 2
      %348 = vperm.xlu0 %347, %v295
      %v349 = vpop.permute.xlu0 %348
      %v351 = vperm.slane %v291, 2
      %v352 = vperm.slane %v291, 6
      %v355 = vperm.slane %v351, 2
      %v356 = vperm.slane %v352, 2
      %v357 = vmul.f32 %v349, %v355
      %v358 = vmul.f32 %v349, %v356
      %v359 = vadd.f32 %v335, %v357
      %v360 = vadd.f32 %v336, %v358
      %v361 = vperm.slane %v294, 2
      %v362 = vperm.slane %v294, 6
      %v365 = vperm.slane %v361, 2
      %v366 = vperm.slane %v362, 2
      %v367 = vmul.f32 %v349, %v365
      %v368 = vmul.f32 %v349, %v366
      %v369 = vadd.f32 %v345, %v367
      %v370 = vadd.f32 %v346, %v368
      %371 = vset.pattern.permute.xlu0 3
      %372 = vperm.xlu0 %371, %v295
      %v373 = vpop.permute.xlu0 %372
      %v375 = vperm.slane %v291, 3
      %v376 = vperm.slane %v291, 7
      %v379 = vperm.slane %v375, 3
      %v380 = vperm.slane %v376, 3
      %v381 = vmul.f32 %v373, %v379
      %v382 = vmul.f32 %v373, %v380
      %v383 = vadd.f32 %v359, %v381
      %v384 = vadd.f32 %v360, %v382
      %v385 = vperm.slane %v294, 3
      %v386 = vperm.slane %v294, 7
      %v389 = vperm.slane %v385, 3
      %v390 = vperm.slane %v386, 3
      %v391 = vmul.f32 %v373, %v389
      %v392 = vmul.f32 %v373, %v390
      %v393 = vadd.f32 %v369, %v391
      %v394 = vadd.f32 %v370, %v392
      %v397 = vrot.slane %v384, 4
      %vm398 = vcmask 1043456
      %v399 = vsel %vm398, %v383, %v397
      %vm401 = vcmask 130052
      %vm402 = vmor %vm401, %vm398
      %403 = vst.msk [vmem:[%s279] sm:$0xff] %vm402, %v399
      %v406 = vrot.slane %v394, 4
      %v407 = vsel %vm398, %v393, %v406
      %409 = vst.msk [vmem:[%s284] sm:$0xff] %vm402, %v407
      %p410 = scmp.lt.s32.totalorder %s18, 1
      %s411 = scalar_select %p410, %s18, 1
      %s412 = smul.addr %s411, 2
      %s413 = smul.addr %s412, 4
      %s414 = scalar_lea.vmem %s5, %s413
      %p415 = scmp.lt.s32.totalorder %s18, 1
      %s416 = scalar_select %p415, %s18, 1
      %s417 = smul.addr %s416, 2
      %s418 = smul.addr %s417, 4
      %s419 = scalar_lea.vmem %s6, %s418
      // Predicated region
      $region41: #{ds_conv_spectral_fno.1} parent=39 // pred_check
        %p420 = pneg %p151
      $region42: #{ds_conv_spectral_fno.1} parent=39 // pred_check_branch
        %422 = sbr.rel (%p420) target = $region44
      $region43: #{ds_conv_spectral_fno.1} parent=39 // pred_region
        _
      $region44: #{ds_conv_spectral_fno.1} parent=39 // pred_fallthru
        _
      // Predicated region
      $region45: #{ds_conv_spectral_fno.1} parent=39 // pred_check
        %p423 = pneg %p177
      $region46: #{ds_conv_spectral_fno.1} parent=39 // pred_check_branch
        %425 = sbr.rel (%p423) target = $region48
      $region47: #{ds_conv_spectral_fno.1} parent=39 // pred_region
        _
      $region48: #{ds_conv_spectral_fno.1} parent=39 // pred_fallthru
        _
    $region40: #{ds_conv_spectral_fno.1} parent=5 // pred_fallthru
      _
    %p426 = scmp.le.s32.totalorder 2, %s13
    // Predicated region
    $region49: #{ds_conv_spectral_fno.1} parent=5 // pred_check
      %p427 = pneg %p426
    $region50: #{ds_conv_spectral_fno.1} parent=5 // pred_check_branch
      %429 = sbr.rel (%p427) target = $region52
    $region51: #{ds_conv_spectral_fno.1} parent=5 // pred_region
      %s430 = ssub.s32 %s13, 2
      // Predicated region
      $region53: #{ds_conv_spectral_fno.1} parent=51 // pred_check
        %p431 = pneg %p157
      $region54: #{ds_conv_spectral_fno.1} parent=51 // pred_check_branch
        %433 = sbr.rel (%p431) target = $region56
      $region55: #{ds_conv_spectral_fno.1} parent=51 // pred_region
        %p434 = scmp.lt.s32.totalorder %s19, 1
        %s435 = scalar_select %p434, %s19, 1
        %s436 = smul.addr %s435, 2
        %s437 = smul.addr %s436, 4
        %s438 = scalar_lea.vmem %s5, %s437
      $region56: #{ds_conv_spectral_fno.1} parent=51 // pred_fallthru
        _
      // Predicated region
      $region57: #{ds_conv_spectral_fno.1} parent=51 // pred_check
        %p439 = pneg %p183
      $region58: #{ds_conv_spectral_fno.1} parent=51 // pred_check_branch
        %441 = sbr.rel (%p439) target = $region60
      $region59: #{ds_conv_spectral_fno.1} parent=51 // pred_region
        %p442 = scmp.lt.s32.totalorder %s19, 1
        %s443 = scalar_select %p442, %s19, 1
        %s444 = smul.addr %s443, 2
        %s445 = smul.addr %s444, 4
        %s446 = scalar_lea.vmem %s6, %s445
      $region60: #{ds_conv_spectral_fno.1} parent=51 // pred_fallthru
        _
    $region52: #{ds_conv_spectral_fno.1} parent=5 // pred_fallthru
      _
  $region6: #{ds_conv_spectral_fno.1} parent=0 // loop_footer
    %s17 = sadd.s32 1, %s13
  $region7: #{ds_conv_spectral_fno.1} parent=0 // loop_footer_branch
    %12 = sbr.rel target = $region3
  $region8: #{ds_conv_spectral_fno.1} parent=0 // loop_exit
    _

// kernel: reverse.0
$region0: #{reverse.0}
  %s0 = inlined_call_operand.vmem [shape: f32[2,4,16,7], index: 0, kind: input, shape index: {}]
  %s1 = inlined_call_operand.vmem [shape: f32[2,4,16,7], index: 1, kind: output, shape index: {}]
  $region1: #{reverse.0} parent=0
    #allocation0 [shape = 'u8[65536]{0}', space=vmem, size = 0x10000, scoped, tag = 'operand span for operand 0']
    #allocation1 [shape = 'u8[32768]{0}', space=vmem, size = 0x8000, scoped, tag = 'operand span for operand 1']
    %s2 = scalar_lea.vmem [#allocation0], 8
    // Predicated region
    $region2: #{reverse.0} parent=1 // pred_check
      _
    $region3: #{reverse.0} parent=1 // pred_check_branch
      %4 = sbr.rel (0) target = $region5
    $region4: #{reverse.0} parent=1 // pred_region
      // Predicated region
      $region6: #{reverse.0} parent=4 // pred_check
        _
      $region7: #{reverse.0} parent=4 // pred_check_branch
        %6 = sbr.rel (0) target = $region9
      $region8: #{reverse.0} parent=4 // pred_region
        // Predicated region
        $region21: #{reverse.0} parent=8 // pred_check
          _
        $region22: #{reverse.0} parent=8 // pred_check_branch
          %36 = sbr.rel (0) target = $region24
        $region23: #{reverse.0} parent=8 // pred_region
          loop: start=0, step=1, limit=1
          $region25: #{reverse.0} parent=23 // loop_pre_header
            _
          $region26: #{reverse.0} parent=23 // loop_header
            %s38 = sphi 0, %s42
            %p39 = scmp.ge.s32.totalorder %s38, 1
            %s43 = sphi %s0, %s0
            %s44 = sphi %s2, %s2
          $region27: #{reverse.0} parent=23 // loop_header_branch
            %41 = sbr.rel (%p39) target = $region31
          $region28: #{reverse.0} parent=23 // loop_body
            %v45 = vld [vmem:[%s43] sm:$0xff]
            %46 = vst [vmem:[%s44] sm:$0xff] %v45
            %v47 = vld [vmem:[%s43 + $0x8] sm:$0xff]
            %48 = vst [vmem:[%s44 + $0x10] sm:$0xff] %v47
            %v49 = vld [vmem:[%s43 + $0x10] sm:$0xff]
            %50 = vst [vmem:[%s44 + $0x20] sm:$0xff] %v49
            %v51 = vld [vmem:[%s43 + $0x18] sm:$0xff]
            %52 = vst [vmem:[%s44 + $0x30] sm:$0xff] %v51
            %v53 = vld [vmem:[%s43 + $0x20] sm:$0xff]
            %54 = vst [vmem:[%s44 + $0x40] sm:$0xff] %v53
            %v55 = vld [vmem:[%s43 + $0x28] sm:$0xff]
            %56 = vst [vmem:[%s44 + $0x50] sm:$0xff] %v55
            %v57 = vld [vmem:[%s43 + $0x30] sm:$0xff]
            %58 = vst [vmem:[%s44 + $0x60] sm:$0xff] %v57
            %v59 = vld [vmem:[%s43 + $0x38] sm:$0xff]
            %60 = vst [vmem:[%s44 + $0x70] sm:$0xff] %v59
          $region29: #{reverse.0} parent=23 // loop_footer
            %s42 = sadd.s32 1, %s38
          $region30: #{reverse.0} parent=23 // loop_footer_branch
            %37 = sbr.rel target = $region26
          $region31: #{reverse.0} parent=23 // loop_exit
            _
        $region24: #{reverse.0} parent=8 // pred_fallthru
          _
        // Predicated region
        $region32: #{reverse.0} parent=8 // pred_check
          _
        $region33: #{reverse.0} parent=8 // pred_check_branch
          %62 = sbr.rel target = $region35
        $region34: #{reverse.0} parent=8 // pred_region
          _
        $region35: #{reverse.0} parent=8 // pred_fallthru
          _
      $region9: #{reverse.0} parent=4 // pred_fallthru
        _
      // Predicated region
      $region10: #{reverse.0} parent=4 // pred_check
        _
      $region11: #{reverse.0} parent=4 // pred_check_branch
        %8 = sbr.rel target = $region13
      $region12: #{reverse.0} parent=4 // pred_region
        %s10 = ssub.s32 256, 1
        loop: start=0, step=1, limit=1
        $region14: #{reverse.0} parent=12 // loop_pre_header
          _
        $region15: #{reverse.0} parent=12 // loop_header
          %s12 = sphi 0, %s16
          %p13 = scmp.ge.s32.totalorder %s12, 1
          %s17 = sphi %s0, %s0
          %s18 = sphi %s2, %s2
        $region16: #{reverse.0} parent=12 // loop_header_branch
          %15 = sbr.rel (%p13) target = $region20
        $region17: #{reverse.0} parent=12 // loop_body
          %v19 = vld [vmem:[%s17] sm:%s10]
          %20 = vst [vmem:[%s18] sm:%s10] %v19
          %v21 = vld [vmem:[%s17 + $0x8] sm:%s10]
          %22 = vst [vmem:[%s18 + $0x10] sm:%s10] %v21
          %v23 = vld [vmem:[%s17 + $0x10] sm:%s10]
          %24 = vst [vmem:[%s18 + $0x20] sm:%s10] %v23
          %v25 = vld [vmem:[%s17 + $0x18] sm:%s10]
          %26 = vst [vmem:[%s18 + $0x30] sm:%s10] %v25
          %v27 = vld [vmem:[%s17 + $0x20] sm:%s10]
          %28 = vst [vmem:[%s18 + $0x40] sm:%s10] %v27
          %v29 = vld [vmem:[%s17 + $0x28] sm:%s10]
          %30 = vst [vmem:[%s18 + $0x50] sm:%s10] %v29
          %v31 = vld [vmem:[%s17 + $0x30] sm:%s10]
          %32 = vst [vmem:[%s18 + $0x60] sm:%s10] %v31
          %v33 = vld [vmem:[%s17 + $0x38] sm:%s10]
          %34 = vst [vmem:[%s18 + $0x70] sm:%s10] %v33
        $region18: #{reverse.0} parent=12 // loop_footer
          %s16 = sadd.s32 1, %s12
        $region19: #{reverse.0} parent=12 // loop_footer_branch
          %11 = sbr.rel target = $region15
        $region20: #{reverse.0} parent=12 // loop_exit
          _
      $region13: #{reverse.0} parent=4 // pred_fallthru
        _
    $region5: #{reverse.0} parent=1 // pred_fallthru
      _
    %63 = vnop
    %s64 = scalar_lea.vmem [#allocation0], 7
    %v65 = vld [vmem:[%s64] ss:$-1 sm:$0xff]
    %v66 = vrot.slane %v65, 1
    %67 = vst [vmem:[#allocation1] sm:$0xff] %v66
    %s68 = scalar_lea.vmem [#allocation0], 8
    %s69 = scalar_lea.vmem %s68, 7 [#allocation0]
    %v70 = vld [vmem:[%s69] ss:$-1 sm:$0xff]
    %v71 = vrot.slane %v70, 1
    %v72 = vlaneseq
    %v73 = vshrl.u32 %v72, 7
    %vm74 = vcmp.lt.s32.totalorder %v73, 7
    %75 = vst.msk [vmem:[#allocation1] sm:$0xff] %vm74, %v71
    %s76 = scalar_lea.vmem [#allocation1], 8
    %s77 = scalar_lea.vmem [#allocation0], 16
    %s78 = scalar_lea.vmem %s77, 7 [#allocation0]
    %v79 = vld [vmem:[%s78] ss:$-1 sm:$0xff]
    %v80 = vrot.slane %v79, 1
    %81 = vst [vmem:[%s76] sm:$0xff] %v80
    %s82 = scalar_lea.vmem %s77, 8 [#allocation0]
    %s83 = scalar_lea.vmem %s82, 7 [#allocation0]
    %v84 = vld [vmem:[%s83] ss:$-1 sm:$0xff]
    %v85 = vrot.slane %v84, 1
    %v86 = vlaneseq
    %v87 = vshrl.u32 %v86, 7
    %vm88 = vcmp.lt.s32.totalorder %v87, 7
    %89 = vst.msk [vmem:[%s76] sm:$0xff] %vm88, %v85
    %s90 = scalar_lea.vmem [#allocation1], 16
    %s91 = scalar_lea.vmem [#allocation0], 32
    %s92 = scalar_lea.vmem %s91, 7 [#allocation0]
    %v93 = vld [vmem:[%s92] ss:$-1 sm:$0xff]
    %v94 = vrot.slane %v93, 1
    %95 = vst [vmem:[%s90] sm:$0xff] %v94
    %s96 = scalar_lea.vmem %s91, 8 [#allocation0]
    %s97 = scalar_lea.vmem %s96, 7 [#allocation0]
    %v98 = vld [vmem:[%s97] ss:$-1 sm:$0xff]
    %v99 = vrot.slane %v98, 1
    %v100 = vlaneseq
    %v101 = vshrl.u32 %v100, 7
    %vm102 = vcmp.lt.s32.totalorder %v101, 7
    %103 = vst.msk [vmem:[%s90] sm:$0xff] %vm102, %v99
    %s104 = scalar_lea.vmem [#allocation1], 24
    %s105 = scalar_lea.vmem [#allocation0], 48
    %s106 = scalar_lea.vmem %s105, 7 [#allocation0]
    %v107 = vld [vmem:[%s106] ss:$-1 sm:$0xff]
    %v108 = vrot.slane %v107, 1
    %109 = vst [vmem:[%s104] sm:$0xff] %v108
    %s110 = scalar_lea.vmem %s105, 8 [#allocation0]
    %s111 = scalar_lea.vmem %s110, 7 [#allocation0]
    %v112 = vld [vmem:[%s111] ss:$-1 sm:$0xff]
    %v113 = vrot.slane %v112, 1
    %v114 = vlaneseq
    %v115 = vshrl.u32 %v114, 7
    %vm116 = vcmp.lt.s32.totalorder %v115, 7
    %117 = vst.msk [vmem:[%s104] sm:$0xff] %vm116, %v113
    %s118 = scalar_lea.vmem [#allocation1], 32
    %s119 = scalar_lea.vmem [#allocation0], 64
    %s120 = scalar_lea.vmem %s119, 7 [#allocation0]
    %v121 = vld [vmem:[%s120] ss:$-1 sm:$0xff]
    %v122 = vrot.slane %v121, 1
    %123 = vst [vmem:[%s118] sm:$0xff] %v122
    %s124 = scalar_lea.vmem %s119, 8 [#allocation0]
    %s125 = scalar_lea.vmem %s124, 7 [#allocation0]
    %v126 = vld [vmem:[%s125] ss:$-1 sm:$0xff]
    %v127 = vrot.slane %v126, 1
    %v128 = vlaneseq
    %v129 = vshrl.u32 %v128, 7
    %vm130 = vcmp.lt.s32.totalorder %v129, 7
    %131 = vst.msk [vmem:[%s118] sm:$0xff] %vm130, %v127
    %s132 = scalar_lea.vmem [#allocation1], 40
    %s133 = scalar_lea.vmem [#allocation0], 80
    %s134 = scalar_lea.vmem %s133, 7 [#allocation0]
    %v135 = vld [vmem:[%s134] ss:$-1 sm:$0xff]
    %v136 = vrot.slane %v135, 1
    %137 = vst [vmem:[%s132] sm:$0xff] %v136
    %s138 = scalar_lea.vmem %s133, 8 [#allocation0]
    %s139 = scalar_lea.vmem %s138, 7 [#allocation0]
    %v140 = vld [vmem:[%s139] ss:$-1 sm:$0xff]
    %v141 = vrot.slane %v140, 1
    %v142 = vlaneseq
    %v143 = vshrl.u32 %v142, 7
    %vm144 = vcmp.lt.s32.totalorder %v143, 7
    %145 = vst.msk [vmem:[%s132] sm:$0xff] %vm144, %v141
    %s146 = scalar_lea.vmem [#allocation1], 48
    %s147 = scalar_lea.vmem [#allocation0], 96
    %s148 = scalar_lea.vmem %s147, 7 [#allocation0]
    %v149 = vld [vmem:[%s148] ss:$-1 sm:$0xff]
    %v150 = vrot.slane %v149, 1
    %151 = vst [vmem:[%s146] sm:$0xff] %v150
    %s152 = scalar_lea.vmem %s147, 8 [#allocation0]
    %s153 = scalar_lea.vmem %s152, 7 [#allocation0]
    %v154 = vld [vmem:[%s153] ss:$-1 sm:$0xff]
    %v155 = vrot.slane %v154, 1
    %v156 = vlaneseq
    %v157 = vshrl.u32 %v156, 7
    %vm158 = vcmp.lt.s32.totalorder %v157, 7
    %159 = vst.msk [vmem:[%s146] sm:$0xff] %vm158, %v155
    %s160 = scalar_lea.vmem [#allocation1], 56
    %s161 = scalar_lea.vmem [#allocation0], 112
    %s162 = scalar_lea.vmem %s161, 7 [#allocation0]
    %v163 = vld [vmem:[%s162] ss:$-1 sm:$0xff]
    %v164 = vrot.slane %v163, 1
    %165 = vst [vmem:[%s160] sm:$0xff] %v164
    %s166 = scalar_lea.vmem %s161, 8 [#allocation0]
    %s167 = scalar_lea.vmem %s166, 7 [#allocation0]
    %v168 = vld [vmem:[%s167] ss:$-1 sm:$0xff]
    %v169 = vrot.slane %v168, 1
    %v170 = vlaneseq
    %v171 = vshrl.u32 %v170, 7
    %vm172 = vcmp.lt.s32.totalorder %v171, 7
    %173 = vst.msk [vmem:[%s160] sm:$0xff] %vm172, %v169
    // Predicated region
    $region36: #{reverse.0} parent=1 // pred_check
      _
    $region37: #{reverse.0} parent=1 // pred_check_branch
      %175 = sbr.rel (0) target = $region39
    $region38: #{reverse.0} parent=1 // pred_region
      // Predicated region
      $region40: #{reverse.0} parent=38 // pred_check
        _
      $region41: #{reverse.0} parent=38 // pred_check_branch
        %177 = sbr.rel (0) target = $region43
      $region42: #{reverse.0} parent=38 // pred_region
        // Predicated region
        $region55: #{reverse.0} parent=42 // pred_check
          _
        $region56: #{reverse.0} parent=42 // pred_check_branch
          %207 = sbr.rel (0) target = $region58
        $region57: #{reverse.0} parent=42 // pred_region
          loop: start=0, step=1, limit=1
          $region59: #{reverse.0} parent=57 // loop_pre_header
            _
          $region60: #{reverse.0} parent=57 // loop_header
            %s209 = sphi 0, %s213
            %p210 = scmp.ge.s32.totalorder %s209, 1
            %s214 = sphi [#allocation1], [#allocation1]
            %s215 = sphi %s1, %s1
          $region61: #{reverse.0} parent=57 // loop_header_branch
            %212 = sbr.rel (%p210) target = $region65
          $region62: #{reverse.0} parent=57 // loop_body
            %v216 = vld [vmem:[%s214] sm:$0xff]
            %217 = vst [vmem:[%s215] sm:$0xff] %v216
            %v218 = vld [vmem:[%s214 + $0x8] sm:$0xff]
            %219 = vst [vmem:[%s215 + $0x8] sm:$0xff] %v218
            %v220 = vld [vmem:[%s214 + $0x10] sm:$0xff]
            %221 = vst [vmem:[%s215 + $0x10] sm:$0xff] %v220
            %v222 = vld [vmem:[%s214 + $0x18] sm:$0xff]
            %223 = vst [vmem:[%s215 + $0x18] sm:$0xff] %v222
            %v224 = vld [vmem:[%s214 + $0x20] sm:$0xff]
            %225 = vst [vmem:[%s215 + $0x20] sm:$0xff] %v224
            %v226 = vld [vmem:[%s214 + $0x28] sm:$0xff]
            %227 = vst [vmem:[%s215 + $0x28] sm:$0xff] %v226
            %v228 = vld [vmem:[%s214 + $0x30] sm:$0xff]
            %229 = vst [vmem:[%s215 + $0x30] sm:$0xff] %v228
            %v230 = vld [vmem:[%s214 + $0x38] sm:$0xff]
            %231 = vst [vmem:[%s215 + $0x38] sm:$0xff] %v230
          $region63: #{reverse.0} parent=57 // loop_footer
            %s213 = sadd.s32 1, %s209
          $region64: #{reverse.0} parent=57 // loop_footer_branch
            %208 = sbr.rel target = $region60
          $region65: #{reverse.0} parent=57 // loop_exit
            _
        $region58: #{reverse.0} parent=42 // pred_fallthru
          _
        // Predicated region
        $region66: #{reverse.0} parent=42 // pred_check
          _
        $region67: #{reverse.0} parent=42 // pred_check_branch
          %233 = sbr.rel target = $region69
        $region68: #{reverse.0} parent=42 // pred_region
          _
        $region69: #{reverse.0} parent=42 // pred_fallthru
          _
      $region43: #{reverse.0} parent=38 // pred_fallthru
        _
      // Predicated region
      $region44: #{reverse.0} parent=38 // pred_check
        _
      $region45: #{reverse.0} parent=38 // pred_check_branch
        %179 = sbr.rel target = $region47
      $region46: #{reverse.0} parent=38 // pred_region
        %s181 = ssub.s32 256, 1
        loop: start=0, step=1, limit=1
        $region48: #{reverse.0} parent=46 // loop_pre_header
          _
        $region49: #{reverse.0} parent=46 // loop_header
          %s183 = sphi 0, %s187
          %p184 = scmp.ge.s32.totalorder %s183, 1
          %s188 = sphi [#allocation1], [#allocation1]
          %s189 = sphi %s1, %s1
        $region50: #{reverse.0} parent=46 // loop_header_branch
          %186 = sbr.rel (%p184) target = $region54
        $region51: #{reverse.0} parent=46 // loop_body
          %v190 = vld [vmem:[%s188] sm:%s181]
          %191 = vst [vmem:[%s189] sm:%s181] %v190
          %v192 = vld [vmem:[%s188 + $0x8] sm:%s181]
          %193 = vst [vmem:[%s189 + $0x8] sm:%s181] %v192
          %v194 = vld [vmem:[%s188 + $0x10] sm:%s181]
          %195 = vst [vmem:[%s189 + $0x10] sm:%s181] %v194
          %v196 = vld [vmem:[%s188 + $0x18] sm:%s181]
          %197 = vst [vmem:[%s189 + $0x18] sm:%s181] %v196
          %v198 = vld [vmem:[%s188 + $0x20] sm:%s181]
          %199 = vst [vmem:[%s189 + $0x20] sm:%s181] %v198
          %v200 = vld [vmem:[%s188 + $0x28] sm:%s181]
          %201 = vst [vmem:[%s189 + $0x28] sm:%s181] %v200
          %v202 = vld [vmem:[%s188 + $0x30] sm:%s181]
          %203 = vst [vmem:[%s189 + $0x30] sm:%s181] %v202
          %v204 = vld [vmem:[%s188 + $0x38] sm:%s181]
          %205 = vst [vmem:[%s189 + $0x38] sm:%s181] %v204
        $region52: #{reverse.0} parent=46 // loop_footer
          %s187 = sadd.s32 1, %s183
        $region53: #{reverse.0} parent=46 // loop_footer_branch
          %182 = sbr.rel target = $region49
        $region54: #{reverse.0} parent=46 // loop_exit
          _
      $region47: #{reverse.0} parent=38 // pred_fallthru
        _
    $region39: #{reverse.0} parent=1 // pred_fallthru
      _
    %234 = vnop

</llo_original>
